<compile_context>
chip_gen: v5e
topology: v5e:2x2
jax: 0.10.0
libtpu: 0.0.40
codegen_flags: <defaults>
</compile_context>

<pallas_src>
import jax
import jax.numpy as jnp
from jax.experimental import pallas as pl
from jax.experimental.pallas import tpu as pltpu


# --------------------------------------------------------------------------- #
# Kernels
# --------------------------------------------------------------------------- #
def _gcn_kernel_full(alpha_ref, adj_ref, xw_ref, o_ref):
    """1-D grid variant: whole reduction (all adjacency columns) in one step.

    alpha_ref: (1,) f32 in SMEM   (shared PReLU parameter)
    adj_ref:   (blk_n, N_pad)     adjacency row strip
    xw_ref:    (N_pad, emb)       pre-projected features (graph @ W.T)
    o_ref:     (blk_n, emb) f32   output tile
    """
    h = jnp.dot(adj_ref[...], xw_ref[...], preferred_element_type=jnp.float32)
    alpha = alpha_ref[0]
    # PReLU with one shared parameter; dropout(p=0) is identity.
    o_ref[...] = jnp.where(h > 0, h, alpha * h).astype(o_ref.dtype)


def _gcn_kernel_acc(alpha_ref, adj_ref, xw_ref, o_ref, acc_ref):
    """2-D grid variant: adjacency columns tiled, f32 accumulator in VMEM.

    adj_ref: (blk_n, blk_k)   adjacency tile
    xw_ref:  (blk_k, emb)     pre-projected feature slab
    acc_ref: (blk_n, emb) f32 accumulator, resident across the k axis
    """
    k = pl.program_id(1)

    @pl.when(k == 0)
    def _init():
        acc_ref[...] = jnp.zeros_like(acc_ref)

    acc_ref[...] += jnp.dot(adj_ref[...], xw_ref[...],
                            preferred_element_type=jnp.float32)

    @pl.when(k == pl.num_programs(1) - 1)
    def _finalize():
        h = acc_ref[...]
        alpha = alpha_ref[0]
        o_ref[...] = jnp.where(h > 0, h, alpha * h).astype(o_ref.dtype)


# --------------------------------------------------------------------------- #
# Tile / VMEM selection
# --------------------------------------------------------------------------- #
def _physical_vmem_bytes():
    try:
        return int(pltpu.get_tpu_info().vmem_capacity_bytes)
    except Exception:
        return 64 * 2**20  # conservative (v7x-sized) fallback


def _block_vmem_bytes(blk_n, blk_k, emb, itemsize, with_acc):
    adj = 2 * blk_n * blk_k * itemsize      # double-buffered adjacency tile
    xw = 2 * blk_k * emb * itemsize         # double-buffered projected features
    out = 2 * blk_n * emb * 4               # double-buffered f32 output tile
    acc = blk_n * emb * 4 if with_acc else 0
    return adj + xw + out + acc


def _select_tiles(n_pad, emb, itemsize, budget):
    """Pick (blk_n, blk_k, needs_acc).  n_pad is a multiple of 256."""
    # Row tiles: as large as possible (<=512) while keeping an even tile count
    # >= 2 so both v7x TensorCores get balanced work (no-op on v5e/v6e).
    blk_n = 128
    for cand in (512, 256, 128):
        if n_pad % cand == 0 and (n_pad // cand) >= 2 and (n_pad // cand) % 2 == 0:
            blk_n = cand
            break

    # Prefer collapsing the reduction axis: one contiguous full-row strip per
    # step, no accumulator, output written exactly once.
    if _block_vmem_bytes(blk_n, n_pad, emb, itemsize, with_acc=False) <= budget:
        return blk_n, n_pad, False

    # Otherwise tile the reduction axis with the biggest divisor that fits.
    for cand in (2048, 1024, 512, 256, 128):
        if n_pad % cand == 0 and _block_vmem_bytes(
                blk_n, cand, emb, itemsize, with_acc=True) <= budget:
            return blk_n, cand, True

    # Last resort for tiny budgets: shrink the row tile as well.
    blk_k = 128
    while blk_n > 128 and _block_vmem_bytes(blk_n, blk_k, emb, itemsize, True) > budget:
        blk_n //= 2
    return blk_n, blk_k, True


# --------------------------------------------------------------------------- #
# Wrapper
# --------------------------------------------------------------------------- #
def graph_convolution(graph, adjacency, weight, prelu_alpha, *,
                      compute_dtype=jnp.bfloat16, vmem_budget_bytes=None):
    """Fused PReLU((adjacency @ graph) @ W.T); dropout(p=0) is identity.

    graph:        [N, in_dims]   float32
    adjacency:    [N, N]         float32
    weight:       [emb, in_dims] float32  (nn.Linear weight, no bias)
    prelu_alpha:  [1]            float32  (shared PReLU parameter)
    compute_dtype: dtype the memory-bound adjacency matmul is streamed in.
                   bf16 (default) halves HBM traffic; accumulation stays f32.
                   Use jnp.float32 for exact PyTorch-f32 numerics.
    returns:      [N, emb]       float32
    """
    n, in_dims = graph.shape
    emb, in_dims_w = weight.shape
    assert adjacency.shape == (n, n)
    assert in_dims_w == in_dims

    # Hoisted feature projection: tiny [N, in_dims] @ [in_dims, emb] done in XLA.
    xw = jnp.dot(graph.astype(jnp.float32), weight.T.astype(jnp.float32))
    xw = xw.astype(compute_dtype)
    adj = adjacency.astype(compute_dtype)
    alpha = prelu_alpha.astype(jnp.float32).reshape((1,))

    # Pad N up to a multiple of 256 so tiles stay MXU / (8,128)-native.
    n_pad = max(256, ((n + 255) // 256) * 256)
    if n_pad != n:
        adj = jnp.pad(adj, ((0, n_pad - n), (0, n_pad - n)))
        xw = jnp.pad(xw, ((0, n_pad - n), (0, 0)))

    itemsize = jnp.dtype(compute_dtype).itemsize

    # Generation-aware VMEM budget / scoped limit.
    phys = _physical_vmem_bytes()
    if phys >= 96 * 2**20:          # v5e / v6e: 128 MiB physical VMEM
        default_budget, vmem_limit = 72 * 2**20, 96 * 2**20
    else:                           # v7x: 64 MiB physical VMEM
        default_budget, vmem_limit = 36 * 2**20, 48 * 2**20
    budget = default_budget if vmem_budget_bytes is None else int(vmem_budget_bytes)

    blk_n, blk_k, needs_acc = _select_tiles(n_pad, emb, itemsize, budget)

    cost = pl.CostEstimate(
        flops=2 * n_pad * n_pad * emb,
        transcendentals=0,
        bytes_accessed=n_pad * n_pad * itemsize + n_pad * emb * (itemsize + 4),
    )

    if not needs_acc:
        # Collapsed reduction: 1-D grid over row tiles, no accumulator/branches.
        out = pl.pallas_call(
            _gcn_kernel_full,
            out_shape=jax.ShapeDtypeStruct((n_pad, emb), jnp.float32),
            grid=(n_pad // blk_n,),
            in_specs=[
                pl.BlockSpec(memory_space=pltpu.MemorySpace.SMEM),   # PReLU alpha
                pl.BlockSpec((blk_n, n_pad), lambda i: (i, 0)),      # adjacency strip
                pl.BlockSpec((n_pad, emb), lambda i: (0, 0)),        # projected feats
            ],
            out_specs=pl.BlockSpec((blk_n, emb), lambda i: (i, 0)),
            compiler_params=pltpu.CompilerParams(
                dimension_semantics=("parallel",),
                vmem_limit_bytes=vmem_limit,
            ),
            cost_estimate=cost,
        )(alpha, adj, xw)
    else:
        # Large N: tile the reduction axis and accumulate in VMEM scratch.
        out = pl.pallas_call(
            _gcn_kernel_acc,
            out_shape=jax.ShapeDtypeStruct((n_pad, emb), jnp.float32),
            grid=(n_pad // blk_n, n_pad // blk_k),
            in_specs=[
                pl.BlockSpec(memory_space=pltpu.MemorySpace.SMEM),       # PReLU alpha
                pl.BlockSpec((blk_n, blk_k), lambda i, k: (i, k)),       # adjacency
                pl.BlockSpec((blk_k, emb), lambda i, k: (k, 0)),         # projected feats
            ],
            out_specs=pl.BlockSpec((blk_n, emb), lambda i, k: (i, 0)),
            scratch_shapes=[pltpu.VMEM((blk_n, emb), jnp.float32)],
            compiler_params=pltpu.CompilerParams(
                dimension_semantics=("parallel", "arbitrary"),
                vmem_limit_bytes=vmem_limit,
            ),
            cost_estimate=cost,
        )(alpha, adj, xw)

    return out[:n] if n_pad != n else out


# --------------------------------------------------------------------------- #
# Self-test
# --------------------------------------------------------------------------- #
if __name__ == "__main__":
    key = jax.random.PRNGKey(0)
    k_graph, k_adj, k_w = jax.random.split(key, 3)

    IN_DIMS = 2     # module default in_dims
    EMB_DIMS = 16   # module default embedding_dims

    def make_inputs(n):
        graph = jax.random.normal(k_graph, (n, IN_DIMS), dtype=jnp.float32)
        adjacency = jax.random.uniform(k_adj, (n, n), dtype=jnp.float32)
        bound = 1.0 / (IN_DIMS ** 0.5)  # nn.Linear-style uniform init
        weight = jax.random.uniform(k_w, (EMB_DIMS, IN_DIMS), dtype=jnp.float32,
                                    minval=-bound, maxval=bound)
        alpha = jnp.array([0.25], dtype=jnp.float32)  # nn.PReLU() default
        return graph, adjacency, weight, alpha

    def prelu(h, a):
        return jnp.where(h > 0, h, a[0] * h)

    # Case 1: default bf16 streaming, collapsed-reduction (1-D grid) kernel.
    N1 = 256
    g1, a1, w1, al1 = make_inputs(N1)
    out1 = jax.block_until_ready(graph_convolution(g1, a1, w1, al1))
    assert out1.shape == (N1, EMB_DIMS)
    # Reference with the same bf16 quantization of the streamed operands.
    xw1 = (g1 @ w1.T).astype(jnp.bfloat16).astype(jnp.float32)
    adj1_q = a1.astype(jnp.bfloat16).astype(jnp.float32)
    ref1 = prelu(adj1_q @ xw1, al1)
    assert jnp.allclose(out1, ref1, atol=1e-3, rtol=1e-3)
    # Loose sanity check against the pure-f32 (PyTorch-equivalent) reference.
    ref1_f32 = prelu((a1 @ g1) @ w1.T, al1)
    assert jnp.allclose(out1, ref1_f32, atol=0.25, rtol=0.05)

    # Case 2: f32 streaming, N not a multiple of 256 (exercises zero-padding),
    # tiny forced budget (exercises the reduction-tiled accumulator kernel).
    N2 = 200
    g2, a2, w2, al2 = make_inputs(N2)
    out2 = jax.block_until_ready(
        graph_convolution(g2, a2, w2, al2,
                          compute_dtype=jnp.float32,
                          vmem_budget_bytes=256 * 1024))
    assert out2.shape == (N2, EMB_DIMS)
    ref2 = prelu((a2 @ g2) @ w2.T, al2)
    assert jnp.allclose(out2, ref2, atol=0.05, rtol=0.02)

    print("KERNEL_OK")
</pallas_src>

<mosaic_0001>
module attributes {stable_mosaic.version = 11 : i64} {
  func.func @_gcn_kernel_full(%arg0: i32, %arg1: memref<1xf32, #tpu.memory_space<smem>>, %arg2: memref<128x256xbf16, #tpu.memory_space<vmem>>, %arg3: memref<256x16xbf16, #tpu.memory_space<vmem>>, %arg4: memref<128x16xf32, #tpu.memory_space<vmem>>) attributes {dimension_semantics = [#tpu.dimension_semantics<parallel>], iteration_bounds = array<i64: 2>, scalar_prefetch = 0 : i64, scratch_operands = 0 : i64, tpu.core_type = #tpu.core_type<tc>, window_params = [{transform_indices = @transform_0, window_bounds = array<i64: 1>}, {transform_indices = @transform_1, window_bounds = array<i64: 128, 256>}, {pipeline_mode = #tpu.pipeline_mode<synchronous>, transform_indices = @transform_2, window_bounds = array<i64: 256, 16>}, {transform_indices = @transform_3, window_bounds = array<i64: 128, 16>}]} {
    %c0 = arith.constant 0 : index
    %c0_0 = arith.constant 0 : index
    %0 = vector.load %arg2[%c0, %c0_0] : memref<128x256xbf16, #tpu.memory_space<vmem>>, vector<128x256xbf16>
    %c0_1 = arith.constant 0 : index
    %c0_2 = arith.constant 0 : index
    %1 = vector.load %arg3[%c0_1, %c0_2] : memref<256x16xbf16, #tpu.memory_space<vmem>>, vector<256x16xbf16>
    %cst = arith.constant dense<0.000000e+00> : vector<128x16xf32>
    %2 = tpu.matmul %0, %1, %cst {dimension_numbers = #tpu.dot_dimension_numbers<[1], [0], [0], [1], [0, 0, 1, 1], [], []>} : vector<128x256xbf16>, vector<256x16xbf16>, vector<128x16xf32> -> vector<128x16xf32>
    %c0_3 = arith.constant 0 : index
    %3 = memref.load %arg1[%c0_3] : memref<1xf32, #tpu.memory_space<smem>>
    %cst_4 = arith.constant 0.000000e+00 : f32
    %4 = vector.broadcast %cst_4 : f32 to vector<128x16xf32>
    %5 = arith.cmpf ogt, %2, %4 : vector<128x16xf32>
    %6 = vector.broadcast %3 : f32 to vector<128x16xf32>
    %7 = arith.mulf %6, %2 : vector<128x16xf32>
    %8 = arith.select %5, %2, %7 : vector<128x16xi1>, vector<128x16xf32>
    %c0_5 = arith.constant 0 : index
    %c0_6 = arith.constant 0 : index
    %9 = vector.load %arg4[%c0_5, %c0_6] : memref<128x16xf32, #tpu.memory_space<vmem>>, vector<128x16xf32>
    tpu.vector_store %arg4[%c0_5, %c0_6], %8 {strides = array<i32>} : memref<128x16xf32, #tpu.memory_space<vmem>>, vector<128x16xf32>,
    return
  }
  func.func @transform_0(%arg0: i32) -> i32 {
    %c0_i32 = arith.constant 0 : i32
    %c0_i32_0 = arith.constant 0 : i32
    return %c0_i32 : i32
  }
  func.func @transform_1(%arg0: i32) -> (i32, i32) {
    %c0_i32 = arith.constant 0 : i32
    %c0_i32_0 = arith.constant 0 : i32
    return %arg0, %c0_i32 : i32, i32
  }
  func.func @transform_2(%arg0: i32) -> (i32, i32) {
    %c0_i32 = arith.constant 0 : i32
    %c0_i32_0 = arith.constant 0 : i32
    %c0_i32_1 = arith.constant 0 : i32
    return %c0_i32, %c0_i32_0 : i32, i32
  }
  func.func @transform_3(%arg0: i32) -> (i32, i32) {
    %c0_i32 = arith.constant 0 : i32
    %c0_i32_0 = arith.constant 0 : i32
    return %arg0, %c0_i32 : i32, i32
  }
}

</mosaic_0001>

<llo_original>
// kernel: tpu_custom_call.1
$region0: #{tpu_custom_call.1}
  #allocation0 [shape = 'u32[]', space=smem, size = 0x4, offset = 0x4, fixed_abs, tag = 'smem constant byte address 0x4 - core index']
  #allocation1 [shape = 'u32[72,128]{1,0:T(1,128)}', space=vmem, size = 0x9000, scoped, tag = 'internal scratch']
  #allocation2 [shape = 'f32[1]{0:T(128)S(6)}', space=smem, size = 0x200, scoped, tag = 'scoped memory for tpu_custom_call.1']
  %s0 = inlined_call_operand.<no memory space> [shape: f32[1], index: 0, kind: input, shape index: {}]
  %s1 = inlined_call_operand.hbm [shape: bf16[256,256], index: 1, kind: input, shape index: {}]
  %s2 = inlined_call_operand.vmem [shape: bf16[256,16], index: 2, kind: input, shape index: {}]
  %s3 = inlined_call_operand.vmem [shape: f32[256,16], index: 3, kind: output, shape index: {}]
  %s4 = sld [smem:[#allocation0]]
  $region49: #{tpu_custom_call.1} parent=0
    _
  %s6 = ssub.s32 1, %s4
  %s7 = scalar_select 0, %s6, %s4
  %8 = sst [smem:[#allocation2]] %s0
  $region1: #{tpu_custom_call.1} parent=0
    #allocation3 [shape = 'u8[131072]{0}', space=vmem, size = 0x20000, scoped, tag = 'input window, operand 1']
    #allocation4 [shape = 's32[2]{0}', space=sflag, size = 0x8, scoped, tag = 'scoped memory for tpu_custom_call.1']
    %9 = vsyncpa [#allocation4], 0
    %s10 = scalar_lea.sflag [#allocation4], 1
    %11 = vsyncpa %s10, 0
    loop: start=0, step=1, limit=4
    $region2: #{tpu_custom_call.1} parent=1 // loop_pre_header
      _
    $region3: #{tpu_custom_call.1} parent=1 // loop_header
      %s13 = sphi 0, %s17
      %p14 = scmp.ge.s32.totalorder %s13, 4
      %s21 = sphi 0, %s21
      %s23 = sphi 0, %s21
      %s24 = sphi 0, %s23
      %s38 = sphi 0, %s24
      %s44 = sphi 0, %s46
      %s47 = sphi 0, %s44
      %s48 = sphi 0, %s47
      %s64 = sphi 0, %s48
      %s68 = sphi 0, %s68
      %s70 = sphi 0, %s68
      %s71 = sphi 0, %s70
      %s85 = sphi 0, %s71
      %s91 = sphi 0, %s93
      %s94 = sphi 0, %s91
      %s95 = sphi 0, %s94
      %s111 = sphi 0, %s95
    $region4: #{tpu_custom_call.1} parent=1 // loop_header_branch
      %16 = sbr.rel (%p14) target = $region8
    $region5: #{tpu_custom_call.1} parent=1 // loop_body
      %s18 = ssub.s32 %s13, 1
      %s19 = ssub.s32 %s13, 2
      %s20 = sadd.s32 %s13, 1
      %s22 = sadd.s32 %s21, 1
      %p25 = scmp.eq.s32.totalorder %s13, 1
      %p26 = scmp.ne.s32.totalorder %s21, %s23
      %p27 = scmp.eq.s32.totalorder %s13, 0
      %p28 = por %p26, %p27
      %p29 = scmp.ne.s32.totalorder %s21, %s23
      %p30 = scmp.eq.s32.totalorder %s18, 1
      %p31 = por %p29, %p30
      %p32 = scmp.ne.s32.totalorder %s23, %s24
      %p33 = scmp.eq.s32.totalorder %s18, 0
      %p34 = por %p32, %p33
      %p35 = scmp.ne.s32.totalorder %s23, %s24
      %p36 = scmp.eq.s32.totalorder %s19, 1
      %p37 = por %p35, %p36
      %p39 = scmp.ne.s32.totalorder %s24, %s38
      %p40 = scmp.eq.s32.totalorder %s19, 0
      %p41 = por %p39, %p40
      %s42 = ssub.s32 %s13, %s20
      %p43 = scmp.eq.s32.totalorder %s42, 0
      %s45 = sadd.s32 %s44, 1
      %s46 = scalar_select %p43, %s44, %s45
      %p49 = pneg %p43
      %p50 = scmp.eq.s32.totalorder %s13, 1
      %p51 = por %p49, %p50
      %p52 = scmp.ne.s32.totalorder %s44, %s47
      %p53 = scmp.eq.s32.totalorder %s13, 0
      %p54 = por %p52, %p53
      %p55 = scmp.ne.s32.totalorder %s44, %s47
      %p56 = scmp.eq.s32.totalorder %s18, 1
      %p57 = por %p55, %p56
      %p58 = scmp.ne.s32.totalorder %s47, %s48
      %p59 = scmp.eq.s32.totalorder %s18, 0
      %p60 = por %p58, %p59
      %p61 = scmp.ne.s32.totalorder %s47, %s48
      %p62 = scmp.eq.s32.totalorder %s19, 1
      %p63 = por %p61, %p62
      %p65 = scmp.ne.s32.totalorder %s48, %s64
      %p66 = scmp.eq.s32.totalorder %s19, 0
      %p67 = por %p65, %p66
      %s69 = sadd.s32 %s68, 1
      %p72 = scmp.eq.s32.totalorder %s13, 1
      %p73 = scmp.ne.s32.totalorder %s68, %s70
      %p74 = scmp.eq.s32.totalorder %s13, 0
      %p75 = por %p73, %p74
      %p76 = scmp.ne.s32.totalorder %s68, %s70
      %p77 = scmp.eq.s32.totalorder %s18, 1
      %p78 = por %p76, %p77
      %p79 = scmp.ne.s32.totalorder %s70, %s71
      %p80 = scmp.eq.s32.totalorder %s18, 0
      %p81 = por %p79, %p80
      %p82 = scmp.ne.s32.totalorder %s70, %s71
      %p83 = scmp.eq.s32.totalorder %s19, 1
      %p84 = por %p82, %p83
      %p86 = scmp.ne.s32.totalorder %s71, %s85
      %p87 = scmp.eq.s32.totalorder %s19, 0
      %p88 = por %p86, %p87
      %s89 = ssub.s32 %s13, %s20
      %p90 = scmp.eq.s32.totalorder %s89, 0
      %s92 = sadd.s32 %s91, 1
      %s93 = scalar_select %p90, %s91, %s92
      %p96 = pneg %p90
      %p97 = scmp.eq.s32.totalorder %s13, 1
      %p98 = por %p96, %p97
      %p99 = scmp.ne.s32.totalorder %s91, %s94
      %p100 = scmp.eq.s32.totalorder %s13, 0
      %p101 = por %p99, %p100
      %p102 = scmp.ne.s32.totalorder %s91, %s94
      %p103 = scmp.eq.s32.totalorder %s18, 1
      %p104 = por %p102, %p103
      %p105 = scmp.ne.s32.totalorder %s94, %s95
      %p106 = scmp.eq.s32.totalorder %s18, 0
      %p107 = por %p105, %p106
      %p108 = scmp.ne.s32.totalorder %s94, %s95
      %p109 = scmp.eq.s32.totalorder %s19, 1
      %p110 = por %p108, %p109
      %p112 = scmp.ne.s32.totalorder %s95, %s111
      %p113 = scmp.eq.s32.totalorder %s19, 0
      %p114 = por %p112, %p113
      %p115 = scmp.le.s32.totalorder 1, %s13
      %p116 = scmp.lt.s32.totalorder %s13, 3
      %p117 = pnand %p115, %p116
      %p118 = pneg %p117
      // Predicated region
      $region9: #{tpu_custom_call.1} parent=5 // pred_check
        _
      $region10: #{tpu_custom_call.1} parent=5 // pred_check_branch
        %120 = sbr.rel (%p117) target = $region12
      $region11: #{tpu_custom_call.1} parent=5 // pred_region
        %s121 = ssub.s32 %s13, 1
        // Predicated region
        $region13: #{tpu_custom_call.1} parent=11 // pred_check
          %p122 = pneg %p34
        $region14: #{tpu_custom_call.1} parent=11 // pred_check_branch
          %124 = sbr.rel (%p122) target = $region16
        $region15: #{tpu_custom_call.1} parent=11 // pred_region
          _
        $region16: #{tpu_custom_call.1} parent=11 // pred_fallthru
          _
        // Predicated region
        $region17: #{tpu_custom_call.1} parent=11 // pred_check
          %p125 = pneg %p81
        $region18: #{tpu_custom_call.1} parent=11 // pred_check_branch
          %127 = sbr.rel (%p125) target = $region20
        $region19: #{tpu_custom_call.1} parent=11 // pred_region
          _
        $region20: #{tpu_custom_call.1} parent=11 // pred_fallthru
          _
      $region12: #{tpu_custom_call.1} parent=5 // pred_fallthru
        _
      %p128 = scmp.lt.s32.totalorder %s13, 2
      // Predicated region
      $region21: #{tpu_custom_call.1} parent=5 // pred_check
        %p129 = pneg %p128
      $region22: #{tpu_custom_call.1} parent=5 // pred_check_branch
        %131 = sbr.rel (%p129) target = $region24
      $region23: #{tpu_custom_call.1} parent=5 // pred_region
        // Predicated region
        $region25: #{tpu_custom_call.1} parent=23 // pred_check
          %p132 = pneg %p54
        $region26: #{tpu_custom_call.1} parent=23 // pred_check_branch
          %134 = sbr.rel (%p132) target = $region28
        $region27: #{tpu_custom_call.1} parent=23 // pred_region
          %s135 = sand.u32 %s44, 1
          %s136 = scalar_lea.sflag [#allocation4], %s135
          %s137 = sand.u32 %s44, 1
          %s138 = smul.addr %s137, 128
          %s139 = scalar_lea.vmem [#allocation3], %s138
          %s140 = smul.u32 16, %s13
          %142 = vsyncadd %s136, 0
          %s143 = smul.addr %s140, 2
          %s144 = smul.addr %s143, 4
          %s145 = scalar_lea.hbm %s1, %s144
          %s146 = sshll.u32 %s145, 4
          %s147 = int_to_ptr.hbm [resolvable:$true] %s146
          %s148 = sshll.u32 %s139, 4
          %s149 = int_to_ptr.vmem [resolvable:$true] %s148
          %154 = dma.hbm_to_vmem [thread:$0]  %s147, 2048, %s149, %s136, 128, 128, 8
        $region28: #{tpu_custom_call.1} parent=23 // pred_fallthru
          _
      $region24: #{tpu_custom_call.1} parent=5 // pred_fallthru
        _
      %p155 = scmp.le.s32.totalorder 1, %s13
      %p156 = scmp.lt.s32.totalorder %s13, 3
      %p157 = pnand %p155, %p156
      %p158 = pneg %p157
      // Predicated region
      $region29: #{tpu_custom_call.1} parent=5 // pred_check
        _
      $region30: #{tpu_custom_call.1} parent=5 // pred_check_branch
        %160 = sbr.rel (%p157) target = $region32
      $region31: #{tpu_custom_call.1} parent=5 // pred_region
        %s161 = ssub.s32 %s13, 1
        %s162 = sand.u32 %s47, 1
        %s163 = scalar_lea.sflag [#allocation4], %s162
        %s164 = sand.u32 %s47, 1
        %s165 = smul.addr %s164, 128
        %s166 = scalar_lea.vmem [#allocation3], %s165
        // Predicated region
        $region33: #{tpu_custom_call.1} parent=31 // pred_check
          %p167 = pneg %p60
        $region34: #{tpu_custom_call.1} parent=31 // pred_check_branch
          %169 = sbr.rel (%p167) target = $region36
        $region35: #{tpu_custom_call.1} parent=31 // pred_region
          %171 = dma.done %s163, 2048
        $region36: #{tpu_custom_call.1} parent=31 // pred_fallthru
          _
        %p172 = pneg %p34
        %p173 = pneg %p31
        %s174 = sand.u32 %s47, 1
        %s175 = scalar_lea.sflag [#allocation4], %s174
        %s176 = sand.u32 %s47, 1
        %s177 = smul.addr %s176, 128
        %s178 = scalar_lea.vmem [#allocation3], %s177
        %p179 = pneg %p60
        %p180 = pneg %p57
        %p181 = pneg %p81
        %p182 = pneg %p78
        %p183 = pneg %p107
        %p184 = pneg %p104
        %s185 = smul.u32 16, %s18
        %p186 = scmp.lt.s32.totalorder %s185, 31
        %s187 = scalar_select %p186, %s185, 31
        %s188 = smul.addr %s187, 8
        %s189 = scalar_lea.vmem %s3, %s188
        %s190 = smul.u32 16, %s18
        %s191 = smul.u32 16, %s18
        %p192 = scmp.lt.s32.totalorder %s191, 31
        %s193 = scalar_select %p192, %s191, 31
        %s194 = smul.addr %s193, 8
        %s195 = scalar_lea.vmem %s3, %s194
        %s196 = smul.u32 16, %s18
        %v197 = vld [vmem:[%s166] sm:$0xff]
        %v198 = vld [vmem:[%s166 + $0x8] sm:$0xff]
        %v199 = vld [vmem:[%s166 + $0x10] sm:$0xff]
        %v200 = vld [vmem:[%s166 + $0x18] sm:$0xff]
        %v201 = vld [vmem:[%s166 + $0x20] sm:$0xff]
        %v202 = vld [vmem:[%s166 + $0x28] sm:$0xff]
        %v203 = vld [vmem:[%s166 + $0x30] sm:$0xff]
        %v204 = vld [vmem:[%s166 + $0x38] sm:$0xff]
        %v205 = vld [vmem:[%s166 + $0x40] sm:$0xff]
        %v206 = vld [vmem:[%s166 + $0x48] sm:$0xff]
        %v207 = vld [vmem:[%s166 + $0x50] sm:$0xff]
        %v208 = vld [vmem:[%s166 + $0x58] sm:$0xff]
        %v209 = vld [vmem:[%s166 + $0x60] sm:$0xff]
        %v210 = vld [vmem:[%s166 + $0x68] sm:$0xff]
        %v211 = vld [vmem:[%s166 + $0x70] sm:$0xff]
        %v212 = vld [vmem:[%s166 + $0x78] sm:$0xff]
        %v213 = vld [vmem:[%s2] sm:$0xf]
        %v214 = vld [vmem:[%s2 + $0x4] sm:$0xf]
        %v215 = vld [vmem:[%s2 + $0x8] sm:$0xf]
        %v216 = vld [vmem:[%s2 + $0xc] sm:$0xf]
        %v217 = vld [vmem:[%s2 + $0x10] sm:$0xf]
        %v218 = vld [vmem:[%s2 + $0x14] sm:$0xf]
        %v219 = vld [vmem:[%s2 + $0x18] sm:$0xf]
        %v220 = vld [vmem:[%s2 + $0x1c] sm:$0xf]
        %v221 = vld [vmem:[%s2 + $0x20] sm:$0xf]
        %v222 = vld [vmem:[%s2 + $0x24] sm:$0xf]
        %v223 = vld [vmem:[%s2 + $0x28] sm:$0xf]
        %v224 = vld [vmem:[%s2 + $0x2c] sm:$0xf]
        %v225 = vld [vmem:[%s2 + $0x30] sm:$0xf]
        %v226 = vld [vmem:[%s2 + $0x34] sm:$0xf]
        %v227 = vld [vmem:[%s2 + $0x38] sm:$0xf]
        %v228 = vld [vmem:[%s2 + $0x3c] sm:$0xf]
        %v229 = vld [vmem:[%s2 + $0x40] sm:$0xf]
        %v230 = vld [vmem:[%s2 + $0x44] sm:$0xf]
        %v231 = vld [vmem:[%s2 + $0x48] sm:$0xf]
        %v232 = vld [vmem:[%s2 + $0x4c] sm:$0xf]
        %v233 = vld [vmem:[%s2 + $0x50] sm:$0xf]
        %v234 = vld [vmem:[%s2 + $0x54] sm:$0xf]
        %v235 = vld [vmem:[%s2 + $0x58] sm:$0xf]
        %v236 = vld [vmem:[%s2 + $0x5c] sm:$0xf]
        %v237 = vld [vmem:[%s2 + $0x60] sm:$0xf]
        %v238 = vld [vmem:[%s2 + $0x64] sm:$0xf]
        %v239 = vld [vmem:[%s2 + $0x68] sm:$0xf]
        %v240 = vld [vmem:[%s2 + $0x6c] sm:$0xf]
        %v241 = vld [vmem:[%s2 + $0x70] sm:$0xf]
        %v242 = vld [vmem:[%s2 + $0x74] sm:$0xf]
        %v243 = vld [vmem:[%s2 + $0x78] sm:$0xf]
        %v244 = vld [vmem:[%s2 + $0x7c] sm:$0xf]
        %v261 = vunpack.c.l.b16 %v197
        %v262 = vunpack.c.h.b16 %v197
        %v263 = vunpack.c.l.b16 %v198
        %v264 = vunpack.c.h.b16 %v198
        %v265 = vunpack.c.l.b16 %v199
        %v266 = vunpack.c.h.b16 %v199
        %v267 = vunpack.c.l.b16 %v200
        %v268 = vunpack.c.h.b16 %v200
        %v269 = vunpack.c.l.b16 %v201
        %v270 = vunpack.c.h.b16 %v201
        %v271 = vunpack.c.l.b16 %v202
        %v272 = vunpack.c.h.b16 %v202
        %v273 = vunpack.c.l.b16 %v203
        %v274 = vunpack.c.h.b16 %v203
        %v275 = vunpack.c.l.b16 %v204
        %v276 = vunpack.c.h.b16 %v204
        %v277 = vunpack.c.l.b16 %v205
        %v278 = vunpack.c.h.b16 %v205
        %v279 = vunpack.c.l.b16 %v206
        %v280 = vunpack.c.h.b16 %v206
        %v281 = vunpack.c.l.b16 %v207
        %v282 = vunpack.c.h.b16 %v207
        %v283 = vunpack.c.l.b16 %v208
        %v284 = vunpack.c.h.b16 %v208
        %v285 = vunpack.c.l.b16 %v209
        %v286 = vunpack.c.h.b16 %v209
        %v287 = vunpack.c.l.b16 %v210
        %v288 = vunpack.c.h.b16 %v210
        %v289 = vunpack.c.l.b16 %v211
        %v290 = vunpack.c.h.b16 %v211
        %v291 = vunpack.c.l.b16 %v212
        %v292 = vunpack.c.h.b16 %v212
        %v293 = vpack.c.b16 %v263, %v261
        %v294 = vpack.c.b16 %v264, %v262
        %v295 = vpack.c.b16 %v267, %v265
        %v296 = vpack.c.b16 %v268, %v266
        %v297 = vpack.c.b16 %v271, %v269
        %v298 = vpack.c.b16 %v272, %v270
        %v299 = vpack.c.b16 %v275, %v273
        %v300 = vpack.c.b16 %v276, %v274
        %v301 = vpack.c.b16 %v279, %v277
        %v302 = vpack.c.b16 %v280, %v278
        %v303 = vpack.c.b16 %v283, %v281
        %v304 = vpack.c.b16 %v284, %v282
        %v305 = vpack.c.b16 %v287, %v285
        %v306 = vpack.c.b16 %v288, %v286
        %v307 = vpack.c.b16 %v291, %v289
        %v308 = vpack.c.b16 %v292, %v290
        %v357 = vunpack.c.l.b16 %v213
        %v358 = vunpack.c.l.b16 %v214
        %v359 = vunpack.c.l.b16 %v215
        %v360 = vunpack.c.l.b16 %v216
        %v361 = vunpack.c.l.b16 %v217
        %v362 = vunpack.c.l.b16 %v218
        %v363 = vunpack.c.l.b16 %v219
        %v364 = vunpack.c.l.b16 %v220
        %v365 = vunpack.c.l.b16 %v221
        %v366 = vunpack.c.l.b16 %v222
        %v367 = vunpack.c.l.b16 %v223
        %v368 = vunpack.c.l.b16 %v224
        %v369 = vunpack.c.l.b16 %v225
        %v370 = vunpack.c.l.b16 %v226
        %v371 = vunpack.c.l.b16 %v227
        %v372 = vunpack.c.l.b16 %v228
        %v373 = vunpack.c.l.b16 %v229
        %v374 = vunpack.c.l.b16 %v230
        %v375 = vunpack.c.l.b16 %v231
        %v376 = vunpack.c.l.b16 %v232
        %v377 = vunpack.c.l.b16 %v233
        %v378 = vunpack.c.l.b16 %v234
        %v379 = vunpack.c.l.b16 %v235
        %v380 = vunpack.c.l.b16 %v236
        %v381 = vunpack.c.l.b16 %v237
        %v382 = vunpack.c.l.b16 %v238
        %v383 = vunpack.c.l.b16 %v239
        %v384 = vunpack.c.l.b16 %v240
        %v385 = vunpack.c.l.b16 %v241
        %v386 = vunpack.c.l.b16 %v242
        %v387 = vunpack.c.l.b16 %v243
        %v388 = vunpack.c.l.b16 %v244
        %v389 = vpack.c.b16 %v358, %v357
        %v390 = vpack.c.b16 %v360, %v359
        %v391 = vpack.c.b16 %v362, %v361
        %v392 = vpack.c.b16 %v364, %v363
        %v393 = vpack.c.b16 %v366, %v365
        %v394 = vpack.c.b16 %v368, %v367
        %v395 = vpack.c.b16 %v370, %v369
        %v396 = vpack.c.b16 %v372, %v371
        %v397 = vpack.c.b16 %v374, %v373
        %v398 = vpack.c.b16 %v376, %v375
        %v399 = vpack.c.b16 %v378, %v377
        %v400 = vpack.c.b16 %v380, %v379
        %v401 = vpack.c.b16 %v382, %v381
        %v402 = vpack.c.b16 %v384, %v383
        %v403 = vpack.c.b16 %v386, %v385
        %v404 = vpack.c.b16 %v388, %v387
        %421 = vmatpush.bf16.msra.mxu0 %v396
        %422 = vmatpush.bf16.msra.mxu0 %v395
        %423 = vmatpush.bf16.msra.mxu0 %v394
        %424 = vmatpush.bf16.msra.mxu0 %v393
        %425 = vmatpush.bf16.msra.mxu0 %v392
        %426 = vmatpush.bf16.msra.mxu0 %v391
        %427 = vmatpush.bf16.msra.mxu0 %v390
        %428 = vmatpush.bf16.msra.mxu0 %v389
        %429 = vmatmul.bf16.gmra.mxu0 %v293
        %v430 = vpop.f32.mrf.mxu0
        %v431 = vadd.f32 0.0, %v430
        %v432 = vpop.f32.mrf.mxu0
        %v433 = vadd.f32 0.0, %v432
        %434 = vmatmul.bf16.gmra.mxu0 %v295
        %v435 = vpop.f32.mrf.mxu0
        %v436 = vadd.f32 0.0, %v435
        %v437 = vpop.f32.mrf.mxu0
        %v438 = vadd.f32 0.0, %v437
        %439 = vmatmul.bf16.gmra.mxu0 %v297
        %v440 = vpop.f32.mrf.mxu0
        %v441 = vadd.f32 0.0, %v440
        %v442 = vpop.f32.mrf.mxu0
        %v443 = vadd.f32 0.0, %v442
        %444 = vmatmul.bf16.gmra.mxu0 %v299
        %v445 = vpop.f32.mrf.mxu0
        %v446 = vadd.f32 0.0, %v445
        %v447 = vpop.f32.mrf.mxu0
        %v448 = vadd.f32 0.0, %v447
        %449 = vmatmul.bf16.gmra.mxu0 %v301
        %v450 = vpop.f32.mrf.mxu0
        %v451 = vadd.f32 0.0, %v450
        %v452 = vpop.f32.mrf.mxu0
        %v453 = vadd.f32 0.0, %v452
        %454 = vmatmul.bf16.gmra.mxu0 %v303
        %v455 = vpop.f32.mrf.mxu0
        %v456 = vadd.f32 0.0, %v455
        %v457 = vpop.f32.mrf.mxu0
        %v458 = vadd.f32 0.0, %v457
        %459 = vmatmul.bf16.gmra.mxu0 %v305
        %v460 = vpop.f32.mrf.mxu0
        %v461 = vadd.f32 0.0, %v460
        %v462 = vpop.f32.mrf.mxu0
        %v463 = vadd.f32 0.0, %v462
        %464 = vmatmul.bf16.gmra.mxu0 %v307
        %v465 = vpop.f32.mrf.mxu0
        %v466 = vadd.f32 0.0, %v465
        %v467 = vpop.f32.mrf.mxu0
        %v468 = vadd.f32 0.0, %v467
        %469 = vdwg.mxu0
        %470 = vmatpush.bf16.msra.mxu0 %v404
        %471 = vmatpush.bf16.msra.mxu0 %v403
        %472 = vmatpush.bf16.msra.mxu0 %v402
        %473 = vmatpush.bf16.msra.mxu0 %v401
        %474 = vmatpush.bf16.msra.mxu0 %v400
        %475 = vmatpush.bf16.msra.mxu0 %v399
        %476 = vmatpush.bf16.msra.mxu0 %v398
        %477 = vmatpush.bf16.msra.mxu0 %v397
        %478 = vmatmul.bf16.gmra.mxu0 %v294
        %v479 = vpop.f32.mrf.mxu0
        %v480 = vadd.f32 %v431, %v479
        %v481 = vpop.f32.mrf.mxu0
        %v482 = vadd.f32 %v433, %v481
        %483 = vmatmul.bf16.gmra.mxu0 %v296
        %v484 = vpop.f32.mrf.mxu0
        %v485 = vadd.f32 %v436, %v484
        %v486 = vpop.f32.mrf.mxu0
        %v487 = vadd.f32 %v438, %v486
        %488 = vmatmul.bf16.gmra.mxu0 %v298
        %v489 = vpop.f32.mrf.mxu0
        %v490 = vadd.f32 %v441, %v489
        %v491 = vpop.f32.mrf.mxu0
        %v492 = vadd.f32 %v443, %v491
        %493 = vmatmul.bf16.gmra.mxu0 %v300
        %v494 = vpop.f32.mrf.mxu0
        %v495 = vadd.f32 %v446, %v494
        %v496 = vpop.f32.mrf.mxu0
        %v497 = vadd.f32 %v448, %v496
        %498 = vmatmul.bf16.gmra.mxu0 %v302
        %v499 = vpop.f32.mrf.mxu0
        %v500 = vadd.f32 %v451, %v499
        %v501 = vpop.f32.mrf.mxu0
        %v502 = vadd.f32 %v453, %v501
        %503 = vmatmul.bf16.gmra.mxu0 %v304
        %v504 = vpop.f32.mrf.mxu0
        %v505 = vadd.f32 %v456, %v504
        %v506 = vpop.f32.mrf.mxu0
        %v507 = vadd.f32 %v458, %v506
        %508 = vmatmul.bf16.gmra.mxu0 %v306
        %v509 = vpop.f32.mrf.mxu0
        %v510 = vadd.f32 %v461, %v509
        %v511 = vpop.f32.mrf.mxu0
        %v512 = vadd.f32 %v463, %v511
        %513 = vmatmul.bf16.gmra.mxu0 %v308
        %v514 = vpop.f32.mrf.mxu0
        %v515 = vadd.f32 %v466, %v514
        %v516 = vpop.f32.mrf.mxu0
        %v517 = vadd.f32 %v468, %v516
        %518 = vdwg.mxu0
        %s519 = sld [smem:[#allocation2]]
        %vm520 = vcmp.gt.f32.partialorder %v480, 0.0
        %vm521 = vcmp.gt.f32.partialorder %v482, 0.0
        %vm522 = vcmp.gt.f32.partialorder %v485, 0.0
        %vm523 = vcmp.gt.f32.partialorder %v487, 0.0
        %vm524 = vcmp.gt.f32.partialorder %v490, 0.0
        %vm525 = vcmp.gt.f32.partialorder %v492, 0.0
        %vm526 = vcmp.gt.f32.partialorder %v495, 0.0
        %vm527 = vcmp.gt.f32.partialorder %v497, 0.0
        %vm528 = vcmp.gt.f32.partialorder %v500, 0.0
        %vm529 = vcmp.gt.f32.partialorder %v502, 0.0
        %vm530 = vcmp.gt.f32.partialorder %v505, 0.0
        %vm531 = vcmp.gt.f32.partialorder %v507, 0.0
        %vm532 = vcmp.gt.f32.partialorder %v510, 0.0
        %vm533 = vcmp.gt.f32.partialorder %v512, 0.0
        %vm534 = vcmp.gt.f32.partialorder %v515, 0.0
        %vm535 = vcmp.gt.f32.partialorder %v517, 0.0
        %v536 = vstv %s519
        %v537 = vmul.f32 %v536, %v480
        %v538 = vmul.f32 %v536, %v482
        %v539 = vmul.f32 %v536, %v485
        %v540 = vmul.f32 %v536, %v487
        %v541 = vmul.f32 %v536, %v490
        %v542 = vmul.f32 %v536, %v492
        %v543 = vmul.f32 %v536, %v495
        %v544 = vmul.f32 %v536, %v497
        %v545 = vmul.f32 %v536, %v500
        %v546 = vmul.f32 %v536, %v502
        %v547 = vmul.f32 %v536, %v505
        %v548 = vmul.f32 %v536, %v507
        %v549 = vmul.f32 %v536, %v510
        %v550 = vmul.f32 %v536, %v512
        %v551 = vmul.f32 %v536, %v515
        %v552 = vmul.f32 %v536, %v517
        %v553 = vsel %vm520, %v480, %v537
        %v554 = vsel %vm521, %v482, %v538
        %v555 = vsel %vm522, %v485, %v539
        %v556 = vsel %vm523, %v487, %v540
        %v557 = vsel %vm524, %v490, %v541
        %v558 = vsel %vm525, %v492, %v542
        %v559 = vsel %vm526, %v495, %v543
        %v560 = vsel %vm527, %v497, %v544
        %v561 = vsel %vm528, %v500, %v545
        %v562 = vsel %vm529, %v502, %v546
        %v563 = vsel %vm530, %v505, %v547
        %v564 = vsel %vm531, %v507, %v548
        %v565 = vsel %vm532, %v510, %v549
        %v566 = vsel %vm533, %v512, %v550
        %v567 = vsel %vm534, %v515, %v551
        %v568 = vsel %vm535, %v517, %v552
        %vm569 = vcmask 130048
        %570 = vst.msk [vmem:[%s195] sm:$0xff] %vm569, %v553
        %571 = vst.msk [vmem:[%s195 + $0x8] sm:$0xff] %vm569, %v554
        %572 = vst.msk [vmem:[%s195 + $0x10] sm:$0xff] %vm569, %v555
        %573 = vst.msk [vmem:[%s195 + $0x18] sm:$0xff] %vm569, %v556
        %574 = vst.msk [vmem:[%s195 + $0x20] sm:$0xff] %vm569, %v557
        %575 = vst.msk [vmem:[%s195 + $0x28] sm:$0xff] %vm569, %v558
        %576 = vst.msk [vmem:[%s195 + $0x30] sm:$0xff] %vm569, %v559
        %577 = vst.msk [vmem:[%s195 + $0x38] sm:$0xff] %vm569, %v560
        %578 = vst.msk [vmem:[%s195 + $0x40] sm:$0xff] %vm569, %v561
        %579 = vst.msk [vmem:[%s195 + $0x48] sm:$0xff] %vm569, %v562
        %580 = vst.msk [vmem:[%s195 + $0x50] sm:$0xff] %vm569, %v563
        %581 = vst.msk [vmem:[%s195 + $0x58] sm:$0xff] %vm569, %v564
        %582 = vst.msk [vmem:[%s195 + $0x60] sm:$0xff] %vm569, %v565
        %583 = vst.msk [vmem:[%s195 + $0x68] sm:$0xff] %vm569, %v566
        %584 = vst.msk [vmem:[%s195 + $0x70] sm:$0xff] %vm569, %v567
        %585 = vst.msk [vmem:[%s195 + $0x78] sm:$0xff] %vm569, %v568
        %s586 = smul.u32 16, %s18
        %p587 = scmp.lt.s32.totalorder %s586, 31
        %s588 = scalar_select %p587, %s586, 31
        %s589 = smul.addr %s588, 8
        %s590 = scalar_lea.vmem %s3, %s589
        // Predicated region
        $region37: #{tpu_custom_call.1} parent=31 // pred_check
          %p591 = pneg %p104
        $region38: #{tpu_custom_call.1} parent=31 // pred_check_branch
          %593 = sbr.rel (%p591) target = $region40
        $region39: #{tpu_custom_call.1} parent=31 // pred_region
          %s594 = smul.u32 16, %s18
        $region40: #{tpu_custom_call.1} parent=31 // pred_fallthru
          _
      $region32: #{tpu_custom_call.1} parent=5 // pred_fallthru
        _
      %p595 = scmp.le.s32.totalorder 2, %s13
      // Predicated region
      $region41: #{tpu_custom_call.1} parent=5 // pred_check
        %p596 = pneg %p595
      $region42: #{tpu_custom_call.1} parent=5 // pred_check_branch
        %598 = sbr.rel (%p596) target = $region44
      $region43: #{tpu_custom_call.1} parent=5 // pred_region
        %s599 = ssub.s32 %s13, 2
        // Predicated region
        $region45: #{tpu_custom_call.1} parent=43 // pred_check
          %p600 = pneg %p110
        $region46: #{tpu_custom_call.1} parent=43 // pred_check_branch
          %602 = sbr.rel (%p600) target = $region48
        $region47: #{tpu_custom_call.1} parent=43 // pred_region
          %s603 = smul.u32 16, %s19
          %p604 = scmp.lt.s32.totalorder %s603, 31
          %s605 = scalar_select %p604, %s603, 31
          %s606 = smul.addr %s605, 8
          %s607 = scalar_lea.vmem %s3, %s606
        $region48: #{tpu_custom_call.1} parent=43 // pred_fallthru
          _
      $region44: #{tpu_custom_call.1} parent=5 // pred_fallthru
        _
    $region6: #{tpu_custom_call.1} parent=1 // loop_footer
      %s17 = sadd.s32 1, %s13
    $region7: #{tpu_custom_call.1} parent=1 // loop_footer_branch
      %12 = sbr.rel target = $region3
    $region8: #{tpu_custom_call.1} parent=1 // loop_exit
      _
    %608 = vsyncpa [#allocation4], 1
    %s609 = scalar_lea.sflag [#allocation4], 1
    %610 = vsyncpa %s609, 1

</llo_original>
